<compile_context>
chip_gen: v5e
topology: v5e:2x2
jax: 0.10.0
libtpu: 0.0.40
codegen_flags: <defaults>
</compile_context>

<pallas_src>
import functools

import jax
import jax.numpy as jnp
from jax.experimental import pallas as pl
from jax.experimental.pallas import tpu as pltpu

MARGIN = 0.3

# VMEM budget for the 3 double-buffered input tiles (bytes).  Conservative so
# it fits the default scoped VMEM on every generation (v5e: 16 MiB default).
_VMEM_INPUT_BUDGET = 8 * 1024 * 1024


def _choose_tile_d(B, D, itemsize, max_tile_d=None):
    """Pick TILE_D (multiple of 128 or full D) and the padded D it divides."""
    limit = D if max_tile_d is None else max_tile_d
    full_bytes = 3 * 2 * B * D * itemsize  # 3 inputs x 2 pipeline buffers
    if full_bytes <= _VMEM_INPUT_BUDGET and D <= limit:
        return D, D  # single full-extent block along D (grid of 1)
    # Tiled path: TILE_D must be a multiple of 128 (lane constraint).
    budget_tile = _VMEM_INPUT_BUDGET // (3 * 2 * B * itemsize)
    tile = max(128, (budget_tile // 128) * 128)
    if max_tile_d is not None:
        tile = max(128, min(tile, (max_tile_d // 128) * 128))
    d_pad = ((D + tile - 1) // tile) * tile
    return tile, d_pad


def triplet_loss_kernel(a_ref, p_ref, n_ref, o_ref, pos_acc, neg_acc, *, margin):
    k = pl.program_id(0)

    @pl.when(k == 0)
    def _init():
        pos_acc[...] = jnp.zeros_like(pos_acc)
        neg_acc[...] = jnp.zeros_like(neg_acc)

    # Load the (B, TILE_D) tiles; always accumulate in f32.
    a = a_ref[...].astype(jnp.float32)
    p = p_ref[...].astype(jnp.float32)
    n = n_ref[...].astype(jnp.float32)

    d_pos = a - p
    d_neg = a - n

    # Per-row (lane-axis) reductions, then a sublane reduction for the scalar.
    pos_row = jnp.sum(d_pos * d_pos, axis=1, keepdims=True)   # (B, 1)
    neg_row = jnp.sum(d_neg * d_neg, axis=1, keepdims=True)   # (B, 1)
    pos_acc[...] += jnp.sum(pos_row, axis=0, keepdims=True)   # (1, 1)
    neg_acc[...] += neg_row                                   # (B, 1)

    @pl.when(k == pl.num_programs(0) - 1)
    def _finalize():
        pos_dist = jnp.sqrt(pos_acc[...])                     # (1, 1) -> bcast
        neg_dist = jnp.sqrt(neg_acc[...])                     # (B, 1)
        loss = jnp.maximum(pos_dist - neg_dist + margin, 0.0)
        o_ref[...] = loss.astype(o_ref.dtype)


def triplet_loss(anchor, positive, negative, *, margin=MARGIN, max_tile_d=None):
    assert anchor.shape == positive.shape == negative.shape
    assert anchor.ndim == 2
    B, D = anchor.shape
    itemsize = jnp.dtype(anchor.dtype).itemsize

    tile_d, d_pad = _choose_tile_d(B, D, itemsize, max_tile_d)
    if d_pad != D:
        # Zero padding along D contributes 0 to both sums of squares.
        pad = ((0, 0), (0, d_pad - D))
        anchor = jnp.pad(anchor, pad)
        positive = jnp.pad(positive, pad)
        negative = jnp.pad(negative, pad)

    grid = (d_pad // tile_d,)

    cost = pl.CostEstimate(
        flops=6 * B * d_pad + 4 * B,
        transcendentals=B + 1,
        bytes_accessed=3 * B * d_pad * itemsize + B * 4,
    )

    out = pl.pallas_call(
        functools.partial(triplet_loss_kernel, margin=margin),
        out_shape=jax.ShapeDtypeStruct((B, 1), jnp.float32),
        grid_spec=pltpu.PrefetchScalarGridSpec(
            num_scalar_prefetch=0,
            grid=grid,
            in_specs=[
                pl.BlockSpec((B, tile_d), lambda k: (0, k)),
                pl.BlockSpec((B, tile_d), lambda k: (0, k)),
                pl.BlockSpec((B, tile_d), lambda k: (0, k)),
            ],
            out_specs=pl.BlockSpec((B, 1), lambda k: (0, 0)),
            scratch_shapes=[
                pltpu.VMEM((1, 1), jnp.float32),   # global pos_sq accumulator
                pltpu.VMEM((B, 1), jnp.float32),   # per-row neg_sq accumulator
            ],
        ),
        compiler_params=pltpu.CompilerParams(
            dimension_semantics=("arbitrary",),
        ),
        cost_estimate=cost,
    )(anchor, positive, negative)
    return out[:, 0]  # (B,), matches the PyTorch loss shape


def _reference(anchor, positive, negative, margin=MARGIN):
    a = anchor.astype(jnp.float32)
    p = positive.astype(jnp.float32)
    n = negative.astype(jnp.float32)
    pos_dist = jnp.sqrt(jnp.sum((a - p) ** 2))
    neg_dist = jnp.sqrt(jnp.sum((a - n) ** 2, axis=1))
    return jnp.maximum(pos_dist - neg_dist + margin, 0.0)


if __name__ == "__main__":
    keys = jax.random.split(jax.random.PRNGKey(0), 9)

    # Case 1: original toy shape, single full-extent block (grid of 1).
    B, D = 8, 32
    a = jax.random.normal(keys[0], (B, D), dtype=jnp.float32)
    p = jax.random.normal(keys[1], (B, D), dtype=jnp.float32)
    n = jax.random.normal(keys[2], (B, D), dtype=jnp.float32)
    out = triplet_loss(a, p, n)
    jax.block_until_ready(out)
    assert out.shape == (B,)
    assert jnp.allclose(out, _reference(a, p, n), atol=1e-5, rtol=1e-5)

    # Case 2: exercise the tiled-D accumulator path (grid of 2 over D).
    B2, D2 = 16, 256
    a2 = jax.random.normal(keys[3], (B2, D2), dtype=jnp.float32)
    p2 = jax.random.normal(keys[4], (B2, D2), dtype=jnp.float32)
    n2 = jax.random.normal(keys[5], (B2, D2), dtype=jnp.float32)
    out2 = triplet_loss(a2, p2, n2, max_tile_d=128)
    jax.block_until_ready(out2)
    assert out2.shape == (B2,)
    assert jnp.allclose(out2, _reference(a2, p2, n2), atol=1e-4, rtol=1e-4)

    # Case 3: bf16 inputs (half the HBM read traffic), f32 accumulation.
    a3 = jax.random.normal(keys[6], (B2, D2), dtype=jnp.bfloat16)
    p3 = jax.random.normal(keys[7], (B2, D2), dtype=jnp.bfloat16)
    n3 = jax.random.normal(keys[8], (B2, D2), dtype=jnp.bfloat16)
    out3 = triplet_loss(a3, p3, n3, max_tile_d=128)
    jax.block_until_ready(out3)
    assert out3.shape == (B2,)
    assert jnp.allclose(out3, _reference(a3, p3, n3), atol=1e-4, rtol=1e-4)

    print("KERNEL_OK")
</pallas_src>

<mosaic_0001>
module attributes {stable_mosaic.version = 11 : i64} {
  func.func @triplet_loss_kernel(%arg0: i32, %arg1: memref<8x32xf32, #tpu.memory_space<vmem>>, %arg2: memref<8x32xf32, #tpu.memory_space<vmem>>, %arg3: memref<8x32xf32, #tpu.memory_space<vmem>>, %arg4: memref<8x1xf32, #tpu.memory_space<vmem>>, %arg5: memref<1x1xf32, #tpu.memory_space<vmem>>, %arg6: memref<8x1xf32, #tpu.memory_space<vmem>>) attributes {dimension_semantics = [#tpu.dimension_semantics<arbitrary>], iteration_bounds = array<i64: 1>, scalar_prefetch = 0 : i64, scratch_operands = 2 : i64, tpu.core_type = #tpu.core_type<tc>, window_params = [{transform_indices = @transform_0, window_bounds = array<i64: 8, 32>}, {transform_indices = @transform_1, window_bounds = array<i64: 8, 32>}, {transform_indices = @transform_2, window_bounds = array<i64: 8, 32>}, {pipeline_mode = #tpu.pipeline_mode<synchronous>, transform_indices = @transform_3, window_bounds = array<i64: 8, 1>}]} {
    %c0_i32 = arith.constant 0 : i32
    %0 = arith.cmpi eq, %arg0, %c0_i32 : i32
    %1 = arith.extui %0 : i1 to i32
    %c0_i32_0 = arith.constant 0 : i32
    %2 = arith.cmpi ne, %1, %c0_i32_0 : i32
    scf.if %2 {
      %cst_18 = arith.constant 0.000000e+00 : f32
      %25 = vector.broadcast %cst_18 : f32 to vector<1x1xf32>
      %c0_19 = arith.constant 0 : index
      %c0_20 = arith.constant 0 : index
      %26 = vector.load %arg5[%c0_19, %c0_20] : memref<1x1xf32, #tpu.memory_space<vmem>>, vector<1x1xf32>
      tpu.vector_store %arg5[%c0_19, %c0_20], %25 {strides = array<i32>} : memref<1x1xf32, #tpu.memory_space<vmem>>, vector<1x1xf32>,
      %cst_21 = arith.constant 0.000000e+00 : f32
      %27 = vector.broadcast %cst_21 : f32 to vector<8x1xf32>
      %c0_22 = arith.constant 0 : index
      %c0_23 = arith.constant 0 : index
      %28 = vector.load %arg6[%c0_22, %c0_23] : memref<8x1xf32, #tpu.memory_space<vmem>>, vector<8x1xf32>
      tpu.vector_store %arg6[%c0_22, %c0_23], %27 {strides = array<i32>} : memref<8x1xf32, #tpu.memory_space<vmem>>, vector<8x1xf32>,
    } else {
    }
    %c0 = arith.constant 0 : index
    %c0_1 = arith.constant 0 : index
    %3 = vector.load %arg1[%c0, %c0_1] : memref<8x32xf32, #tpu.memory_space<vmem>>, vector<8x32xf32>
    %c0_2 = arith.constant 0 : index
    %c0_3 = arith.constant 0 : index
    %4 = vector.load %arg2[%c0_2, %c0_3] : memref<8x32xf32, #tpu.memory_space<vmem>>, vector<8x32xf32>
    %c0_4 = arith.constant 0 : index
    %c0_5 = arith.constant 0 : index
    %5 = vector.load %arg3[%c0_4, %c0_5] : memref<8x32xf32, #tpu.memory_space<vmem>>, vector<8x32xf32>
    %6 = arith.subf %3, %4 : vector<8x32xf32>
    %7 = arith.subf %3, %5 : vector<8x32xf32>
    %8 = arith.mulf %6, %6 : vector<8x32xf32>
    %cst = arith.constant dense<0.000000e+00> : vector<8xf32>
    %9 = vector.multi_reduction <add>, %8, %cst [1] : vector<8x32xf32> to vector<8xf32>
    %10 = vector.shape_cast %9 : vector<8xf32> to vector<8x1xf32>
    %11 = arith.mulf %7, %7 : vector<8x32xf32>
    %cst_6 = arith.constant dense<0.000000e+00> : vector<8xf32>
    %12 = vector.multi_reduction <add>, %11, %cst_6 [1] : vector<8x32xf32> to vector<8xf32>
    %13 = vector.shape_cast %12 : vector<8xf32> to vector<8x1xf32>
    %c0_7 = arith.constant 0 : index
    %c0_8 = arith.constant 0 : index
    %14 = vector.load %arg5[%c0_7, %c0_8] : memref<1x1xf32, #tpu.memory_space<vmem>>, vector<1x1xf32>
    %cst_9 = arith.constant dense<0.000000e+00> : vector<1xf32>
    %15 = vector.multi_reduction <add>, %10, %cst_9 [0] : vector<8x1xf32> to vector<1xf32>
    %16 = vector.shape_cast %15 : vector<1xf32> to vector<1x1xf32>
    %17 = arith.addf %14, %16 : vector<1x1xf32>
    %c0_10 = arith.constant 0 : index
    %c0_11 = arith.constant 0 : index
    %18 = vector.load %arg5[%c0_10, %c0_11] : memref<1x1xf32, #tpu.memory_space<vmem>>, vector<1x1xf32>
    tpu.vector_store %arg5[%c0_10, %c0_11], %17 {strides = array<i32>} : memref<1x1xf32, #tpu.memory_space<vmem>>, vector<1x1xf32>,
    %c0_12 = arith.constant 0 : index
    %c0_13 = arith.constant 0 : index
    %19 = vector.load %arg6[%c0_12, %c0_13] : memref<8x1xf32, #tpu.memory_space<vmem>>, vector<8x1xf32>
    %20 = arith.addf %19, %13 : vector<8x1xf32>
    %c0_14 = arith.constant 0 : index
    %c0_15 = arith.constant 0 : index
    %21 = vector.load %arg6[%c0_14, %c0_15] : memref<8x1xf32, #tpu.memory_space<vmem>>, vector<8x1xf32>
    tpu.vector_store %arg6[%c0_14, %c0_15], %20 {strides = array<i32>} : memref<8x1xf32, #tpu.memory_space<vmem>>, vector<8x1xf32>,
    %c0_i32_16 = arith.constant 0 : i32
    %22 = arith.cmpi eq, %arg0, %c0_i32_16 : i32
    %23 = arith.extui %22 : i1 to i32
    %c0_i32_17 = arith.constant 0 : i32
    %24 = arith.cmpi ne, %23, %c0_i32_17 : i32
    scf.if %24 {
      %c0_18 = arith.constant 0 : index
      %c0_19 = arith.constant 0 : index
      %25 = vector.load %arg5[%c0_18, %c0_19] : memref<1x1xf32, #tpu.memory_space<vmem>>, vector<1x1xf32>
      %26 = math.sqrt %25 : vector<1x1xf32>
      %c0_20 = arith.constant 0 : index
      %c0_21 = arith.constant 0 : index
      %27 = vector.load %arg6[%c0_20, %c0_21] : memref<8x1xf32, #tpu.memory_space<vmem>>, vector<8x1xf32>
      %28 = math.sqrt %27 : vector<8x1xf32>
      %29 = vector.broadcast %26 : vector<1x1xf32> to vector<8x1xf32>
      %30 = arith.subf %29, %28 : vector<8x1xf32>
      %cst_22 = arith.constant 3.000000e-01 : f32
      %31 = vector.broadcast %cst_22 : f32 to vector<8x1xf32>
      %32 = arith.addf %30, %31 : vector<8x1xf32>
      %cst_23 = arith.constant 0.000000e+00 : f32
      %33 = vector.broadcast %cst_23 : f32 to vector<8x1xf32>
      %34 = arith.maximumf %32, %33 : vector<8x1xf32>
      %c0_24 = arith.constant 0 : index
      %c0_25 = arith.constant 0 : index
      %35 = vector.load %arg4[%c0_24, %c0_25] : memref<8x1xf32, #tpu.memory_space<vmem>>, vector<8x1xf32>
      tpu.vector_store %arg4[%c0_24, %c0_25], %34 {strides = array<i32>} : memref<8x1xf32, #tpu.memory_space<vmem>>, vector<8x1xf32>,
    } else {
    }
    return
  }
  func.func @transform_0(%arg0: i32) -> (i32, i32) {
    %c0_i32 = arith.constant 0 : i32
    %c0_i32_0 = arith.constant 0 : i32
    return %c0_i32, %arg0 : i32, i32
  }
  func.func @transform_1(%arg0: i32) -> (i32, i32) {
    %c0_i32 = arith.constant 0 : i32
    %c0_i32_0 = arith.constant 0 : i32
    return %c0_i32, %arg0 : i32, i32
  }
  func.func @transform_2(%arg0: i32) -> (i32, i32) {
    %c0_i32 = arith.constant 0 : i32
    %c0_i32_0 = arith.constant 0 : i32
    return %c0_i32, %arg0 : i32, i32
  }
  func.func @transform_3(%arg0: i32) -> (i32, i32) {
    %c0_i32 = arith.constant 0 : i32
    %c0_i32_0 = arith.constant 0 : i32
    %c0_i32_1 = arith.constant 0 : i32
    return %c0_i32, %c0_i32_0 : i32, i32
  }
}

</mosaic_0001>

<llo_original>
// kernel: tpu_custom_call.1
$region0: #{tpu_custom_call.1}
  #allocation0 [shape = 'u32[]', space=smem, size = 0x4, offset = 0x4, fixed_abs, tag = 'smem constant byte address 0x4 - core index']
  #allocation1 [shape = 'u32[72,128]{1,0:T(1,128)}', space=vmem, size = 0x9000, scoped, tag = 'internal scratch']
  #allocation2 [shape = 'f32[1,1]{1,0:T(1,128)}', space=vmem, size = 0x200, scoped, tag = 'scratch operand']
  #allocation3 [shape = 'f32[8,1]{1,0:T(8,128)}', space=vmem, size = 0x1000, scoped, tag = 'scratch operand']
  %s0 = inlined_call_operand.hbm [shape: f32[8,32], index: 0, kind: input, shape index: {}]
  %s1 = inlined_call_operand.hbm [shape: f32[8,32], index: 1, kind: input, shape index: {}]
  %s2 = inlined_call_operand.hbm [shape: f32[8,32], index: 2, kind: input, shape index: {}]
  %s3 = inlined_call_operand.vmem [shape: f32[8,1], index: 3, kind: output, shape index: {}]
  %s4 = sld [smem:[#allocation0]]
  $region42: #{tpu_custom_call.1} parent=0
    _
  %s6 = ssub.s32 1, %s4
  %s7 = scalar_select 0, %s6, %s4
  $region1: #{tpu_custom_call.1} parent=0
    #allocation4 [shape = 'u8[4096]{0}', space=vmem, size = 0x1000, scoped, tag = 'input window, operand 0, single buffered']
    #allocation5 [shape = 's32[1]{0}', space=sflag, size = 0x4, scoped, tag = 'scoped memory for tpu_custom_call.1']
    #allocation6 [shape = 'u8[4096]{0}', space=vmem, size = 0x1000, scoped, tag = 'input window, operand 1, single buffered']
    #allocation7 [shape = 's32[1]{0}', space=sflag, size = 0x4, scoped, tag = 'scoped memory for tpu_custom_call.1']
    #allocation8 [shape = 'u8[4096]{0}', space=vmem, size = 0x1000, scoped, tag = 'input window, operand 2, single buffered']
    %8 = vsyncpa [#allocation5], 0
    %9 = vsyncpa [#allocation7], 0
    // Predicated region
    $region2: #{tpu_custom_call.1} parent=1 // pred_check
      _
    $region3: #{tpu_custom_call.1} parent=1 // pred_check_branch
      %11 = sbr.rel (0) target = $region5
    $region4: #{tpu_custom_call.1} parent=1 // pred_region
      %13 = vsyncadd [#allocation5], 0
      %s15 = sshll.u32 %s0, 4
      %s16 = int_to_ptr.hbm [resolvable:$true] %s15
      %s17 = sshll.u32 [#allocation4], 4
      %s18 = int_to_ptr.vmem [resolvable:$true] %s17
      %20 = dma.hbm_to_vmem [thread:$0]  %s16, 128, %s18, [#allocation5]
    $region5: #{tpu_custom_call.1} parent=1 // pred_fallthru
      _
    // Predicated region
    $region6: #{tpu_custom_call.1} parent=1 // pred_check
      _
    $region7: #{tpu_custom_call.1} parent=1 // pred_check_branch
      %22 = sbr.rel (0) target = $region9
    $region8: #{tpu_custom_call.1} parent=1 // pred_region
      %24 = vsyncadd [#allocation7], 0
      %s26 = sshll.u32 %s1, 4
      %s27 = int_to_ptr.hbm [resolvable:$true] %s26
      %s28 = sshll.u32 [#allocation6], 4
      %s29 = int_to_ptr.vmem [resolvable:$true] %s28
      %31 = dma.hbm_to_vmem [thread:$0]  %s27, 128, %s29, [#allocation7]
    $region9: #{tpu_custom_call.1} parent=1 // pred_fallthru
      _
    // Predicated region
    $region10: #{tpu_custom_call.1} parent=1 // pred_check
      _
    $region11: #{tpu_custom_call.1} parent=1 // pred_check_branch
      %33 = sbr.rel (0) target = $region13
    $region12: #{tpu_custom_call.1} parent=1 // pred_region
      %35 = vsyncadd [#allocation7], 0
      %s37 = sshll.u32 %s2, 4
      %s38 = int_to_ptr.hbm [resolvable:$true] %s37
      %s39 = sshll.u32 [#allocation8], 4
      %s40 = int_to_ptr.vmem [resolvable:$true] %s39
      %42 = dma.hbm_to_vmem [thread:$0]  %s38, 128, %s40, [#allocation7]
    $region13: #{tpu_custom_call.1} parent=1 // pred_fallthru
      _
    // Predicated region
    $region14: #{tpu_custom_call.1} parent=1 // pred_check
      _
    $region15: #{tpu_custom_call.1} parent=1 // pred_check_branch
      %44 = sbr.rel (0) target = $region17
    $region16: #{tpu_custom_call.1} parent=1 // pred_region
      %46 = dma.done [#allocation5], 128
    $region17: #{tpu_custom_call.1} parent=1 // pred_fallthru
      _
    // Predicated region
    $region18: #{tpu_custom_call.1} parent=1 // pred_check
      _
    $region19: #{tpu_custom_call.1} parent=1 // pred_check_branch
      %48 = sbr.rel (0) target = $region21
    $region20: #{tpu_custom_call.1} parent=1 // pred_region
      %50 = dma.done [#allocation7], 128
    $region21: #{tpu_custom_call.1} parent=1 // pred_fallthru
      _
    // Predicated region
    $region22: #{tpu_custom_call.1} parent=1 // pred_check
      _
    $region23: #{tpu_custom_call.1} parent=1 // pred_check_branch
      %52 = sbr.rel (0) target = $region25
    $region24: #{tpu_custom_call.1} parent=1 // pred_region
      %54 = dma.done [#allocation7], 128
    $region25: #{tpu_custom_call.1} parent=1 // pred_fallthru
      _
    %p55 = scmp.eq.s32.totalorder 0, 0
    // Predicated region
    $region26: #{tpu_custom_call.1} parent=1 // pred_check
      %p56 = pneg %p55
    $region27: #{tpu_custom_call.1} parent=1 // pred_check_branch
      %58 = sbr.rel (%p56) target = $region29
    $region28: #{tpu_custom_call.1} parent=1 // pred_region
      %vm59 = vcmask 0
      %60 = vst.msk [vmem:[#allocation2] sm:$0x1] %vm59, 0.0
      %vm61 = vcmask 7168
      %62 = vst.msk [vmem:[#allocation3] sm:$0xff] %vm61, 0.0
    $region29: #{tpu_custom_call.1} parent=1 // pred_fallthru
      _
    %v63 = vld [vmem:[#allocation4] sm:$0xff]
    %v64 = vld [vmem:[#allocation6] sm:$0xff]
    %v65 = vld [vmem:[#allocation8] sm:$0xff]
    %v66 = vsub.f32 %v63, %v64
    %v67 = vsub.f32 %v63, %v65
    %v68 = vmul.f32 %v66, %v66
    %vm69 = vcmask 261120
    %v70 = vsel %vm69, %v68, 0.0
    %71 = vadd.xlane.f32.xlu0 %v70
    %v72 = vpop.xlane.xlu0 %71
    %v73 = vmul.f32 %v67, %v67
    %v74 = vsel %vm69, %v73, 0.0
    %75 = vadd.xlane.f32.xlu0 %v74
    %v76 = vpop.xlane.xlu0 %75
    %v77 = vld [vmem:[#allocation2] sm:$0x1]
    %v78 = vrot.slane %v72, 4
    %v79 = vadd.f32 %v72, %v78
    %v80 = vrot.slane %v79, 2
    %v81 = vadd.f32 %v79, %v80
    %v82 = vrot.slane %v81, 1
    %v83 = vadd.f32 %v81, %v82
    %v84 = vadd.f32 %v77, %v83
    %vm85 = vcmask 0
    %86 = vst.msk [vmem:[#allocation2] sm:$0x1] %vm85, %v84
    %v87 = vld [vmem:[#allocation3] sm:$0xff]
    %v88 = vadd.f32 %v87, %v76
    %vm89 = vcmask 7168
    %90 = vst.msk [vmem:[#allocation3] sm:$0xff] %vm89, %v88
    // Predicated region
    $region30: #{tpu_custom_call.1} parent=1 // pred_check
      %p91 = pneg %p55
    $region31: #{tpu_custom_call.1} parent=1 // pred_check_branch
      %93 = sbr.rel (%p91) target = $region33
    $region32: #{tpu_custom_call.1} parent=1 // pred_region
      %v94 = vld [vmem:[#allocation2] sm:$0x1]
      %v95 = vrsqrt.pop %v94
      %v96 = vmul.f32 %v95, %v94
      %v97 = vmul.f32 %v96, %v95
      %v98 = vmul.f32 0.5, %v97
      %v99 = vsub.f32 1.5, %v98
      %v100 = vmul.f32 %v95, %v99
      %v101 = vmul.f32 %v94, %v100
      %vm102 = vcmp.eq.f32.partialorder %v94, inf
      %v103 = vsel %vm102, %v94, %v101
      %vm104 = vcmp.eq.f32.partialorder %v94, 0.0
      %v105 = vand.u32 %v94, 2147483648
      %v106 = vsel %vm104, %v105, %v103
      %v107 = vld [vmem:[#allocation3] sm:$0xff]
      %v108 = vrsqrt.pop %v107
      %v109 = vmul.f32 %v108, %v107
      %v110 = vmul.f32 %v109, %v108
      %v111 = vmul.f32 0.5, %v110
      %v112 = vsub.f32 1.5, %v111
      %v113 = vmul.f32 %v108, %v112
      %v114 = vmul.f32 %v107, %v113
      %vm115 = vcmp.eq.f32.partialorder %v107, inf
      %v116 = vsel %vm115, %v107, %v114
      %vm117 = vcmp.eq.f32.partialorder %v107, 0.0
      %v118 = vand.u32 %v107, 2147483648
      %v119 = vsel %vm117, %v118, %v116
      %v121 = vperm.slane %v106, 0
      %v123 = vsub.f32 %v121, %v119
      %v124 = vadd.f32 %v123, 0.3
      %v125 = vmax.f32 %v124, 0.0
      %126 = vst.msk [vmem:[%s3] sm:$0xff] %vm89, %v125
    $region33: #{tpu_custom_call.1} parent=1 // pred_fallthru
      _
    // Predicated region
    $region34: #{tpu_custom_call.1} parent=1 // pred_check
      _
    $region35: #{tpu_custom_call.1} parent=1 // pred_check_branch
      %128 = sbr.rel (0) target = $region37
    $region36: #{tpu_custom_call.1} parent=1 // pred_region
      _
    $region37: #{tpu_custom_call.1} parent=1 // pred_fallthru
      _
    // Predicated region
    $region38: #{tpu_custom_call.1} parent=1 // pred_check
      _
    $region39: #{tpu_custom_call.1} parent=1 // pred_check_branch
      %130 = sbr.rel (0) target = $region41
    $region40: #{tpu_custom_call.1} parent=1 // pred_region
      _
    $region41: #{tpu_custom_call.1} parent=1 // pred_fallthru
      _
    %131 = vsyncpa [#allocation5], 1
    %132 = vsyncpa [#allocation7], 1

</llo_original>
